<compile_context>
chip_gen: v7x
topology: tpu7x:2x2x1
jax: 0.10.0
libtpu: 0.0.40
codegen_flags: <defaults>
</compile_context>

<pallas_src>
import functools

import jax
import jax.numpy as jnp
from jax import lax
from jax.experimental import pallas as pl
from jax.experimental.pallas import tpu as pltpu

_LANES = 128


def _cdiv(a, b):
    return (a + b - 1) // b


@functools.lru_cache(maxsize=None)
def _vmem_budget():
    """(input double-buffer budget bytes, vmem_limit_bytes) per TPU generation."""
    cap = None
    try:
        info = pltpu.get_tpu_info()
        cap = getattr(info, "vmem_capacity_bytes", None)
    except Exception:
        cap = None
    if cap is not None and cap >= 96 * 1024 * 1024:
        # v5e / v6e: 128 MiB physical VMEM -> large tiles amortize grid overhead.
        return 20 * 1024 * 1024, 64 * 1024 * 1024
    # v7x (64 MiB physical VMEM) or unknown: stay conservative.
    return 8 * 1024 * 1024, 32 * 1024 * 1024


def _pick_divisor(n, align, cap, prefer_multiple_blocks=False):
    """Largest d with d % align == 0, n % d == 0, d <= min(n, cap).

    If prefer_multiple_blocks, prefer the largest such d that still leaves
    n // d >= 2 blocks (so a 'parallel' grid axis can be sharded across the
    two v7x TensorCores).  Returns None if no aligned divisor exists.
    """
    cap = min(n, cap)
    best = None
    best_multi = None
    d = align
    while d <= cap:
        if n % d == 0:
            best = d
            if n // d >= 2:
                best_multi = d
        d += align
    if prefer_multiple_blocks and best_multi is not None:
        return best_multi
    return best


# ----------------------------------------------------------------------------
# Kernel A: row sums over the last axis of a 2-D (M, K) view.
#           Lane-dense (TM, acc_w) accumulator; cross-lane reduce only at end.
# ----------------------------------------------------------------------------
def _row_sum_kernel(a_ref, b_ref, o_ref, acc_ref, *, k_total, tk, acc_w, mask_k):
    k = pl.program_id(1)

    @pl.when(k == 0)
    def _init():
        acc_ref[...] = jnp.zeros_like(acc_ref)

    # Widen before the add (precision / overflow safety for narrow dtypes).
    s = a_ref[...].astype(jnp.float32) + b_ref[...].astype(jnp.float32)  # (TM, TK)

    if mask_k:
        # Zero the out-of-bounds columns of the (padded) last K block.
        col = lax.broadcasted_iota(jnp.int32, s.shape, 1) + k * tk
        s = jnp.where(col < k_total, s, jnp.float32(0.0))

    if tk > acc_w:
        # Fold TK lanes down to acc_w lanes with lane-aligned slice adds
        # (pure VPU, no XLU work inside the K loop).
        folded = s[:, 0:acc_w]
        for j in range(1, tk // acc_w):
            folded = folded + s[:, j * acc_w:(j + 1) * acc_w]
    else:
        folded = s
    acc_ref[...] += folded

    @pl.when(k == pl.num_programs(1) - 1)
    def _fin():
        # Single cross-lane reduce per output row, outside the hot loop.
        o_ref[...] = jnp.sum(acc_ref[...], axis=-1, keepdims=True)


def _row_sums_2d(a2, b2):
    """a2, b2: (M, K). Returns (M, 1) float32 row sums of a2 + b2."""
    M, K = a2.shape
    itemsize = jnp.dtype(a2.dtype).itemsize
    budget, vmem_limit = _vmem_budget()

    # ---- K (lane) tile ----
    lane_cap = 2048
    if K <= lane_cap:
        TK, kt, mask_k = K, 1, False                       # full extent is legal
    else:
        TK = _pick_divisor(K, _LANES, lane_cap)
        if TK is not None:
            kt, mask_k = K // TK, False
        else:
            TK = (lane_cap // _LANES) * _LANES             # 2048, multiple of 128
            kt, mask_k = _cdiv(K, TK), True                # mask the padded tail

    acc_w = _LANES if TK % _LANES == 0 else TK

    # ---- M (sublane) tile, sized to the input double-buffer budget ----
    max_rows = max(8, budget // (4 * TK * itemsize))       # 2 inputs x 2 buffers
    row_cap = min(max_rows, 4096)
    TM = _pick_divisor(M, 8, row_cap, prefer_multiple_blocks=True)
    if TM is not None:
        mt = M // TM
    elif M <= row_cap:
        TM, mt = M, 1                                      # full extent is legal
    else:
        TM = (row_cap // 8) * 8
        mt = _cdiv(M, TM)                                  # tail rows are discarded

    # TODO(synk): for M-small / K-huge shapes (mt == 1) on v7x, split K across
    # the two cores with per-core partial sums + a tiny combine.

    kernel = functools.partial(
        _row_sum_kernel, k_total=K, tk=TK, acc_w=acc_w, mask_k=mask_k)
    cost = pl.CostEstimate(
        flops=2 * M * K,
        transcendentals=0,
        bytes_accessed=2 * M * K * itemsize + M * 4,
    )
    return pl.pallas_call(
        kernel,
        out_shape=jax.ShapeDtypeStruct((M, 1), jnp.float32),
        grid=(mt, kt),
        in_specs=[
            pl.BlockSpec((TM, TK), lambda i, k: (i, k)),
            pl.BlockSpec((TM, TK), lambda i, k: (i, k)),
        ],
        out_specs=pl.BlockSpec((TM, 1), lambda i, k: (i, 0)),
        scratch_shapes=[pltpu.VMEM((TM, acc_w), jnp.float32)],
        compiler_params=pltpu.CompilerParams(
            dimension_semantics=("parallel", "arbitrary"),
            vmem_limit_bytes=vmem_limit,
        ),
        cost_estimate=cost,
    )(a2, b2)


# ----------------------------------------------------------------------------
# Kernel B: sums over the middle axis of a 3-D (P, R, Q) view (no transpose).
# ----------------------------------------------------------------------------
def _mid_sum_oneshot_kernel(a_ref, b_ref, o_ref):
    # Full reduce extent in one block: no scratch, no init/finalize branches.
    s = a_ref[...].astype(jnp.float32) + b_ref[...].astype(jnp.float32)  # (TP,R,TQ)
    o_ref[...] = jnp.sum(s, axis=1, keepdims=True)                        # (TP,1,TQ)


def _mid_sum_acc_kernel(a_ref, b_ref, o_ref, acc_ref, *, r_total, tr, mask_r):
    r = pl.program_id(2)

    @pl.when(r == 0)
    def _init():
        acc_ref[...] = jnp.zeros_like(acc_ref)

    s = a_ref[...].astype(jnp.float32) + b_ref[...].astype(jnp.float32)  # (TP,TR,TQ)
    if mask_r:
        row = lax.broadcasted_iota(jnp.int32, s.shape, 1) + r * tr
        s = jnp.where(row < r_total, s, jnp.float32(0.0))
    acc_ref[...] += jnp.sum(s, axis=1, keepdims=True)                     # (TP,1,TQ)

    @pl.when(r == pl.num_programs(2) - 1)
    def _fin():
        o_ref[...] = acc_ref[...]


def _mid_sums_3d(a3, b3):
    """a3, b3: (P, R, Q). Returns (P, 1, Q) float32 sums over axis 1."""
    P, R, Q = a3.shape
    itemsize = jnp.dtype(a3.dtype).itemsize
    budget, vmem_limit = _vmem_budget()

    # ---- Q (lane) tile ----
    lane_cap = 2048
    if Q <= lane_cap:
        TQ, qt = Q, 1
    else:
        TQ = _pick_divisor(Q, _LANES, lane_cap, prefer_multiple_blocks=True)
        if TQ is not None:
            qt = Q // TQ
        else:
            TQ = (lane_cap // _LANES) * _LANES
            qt = _cdiv(Q, TQ)                               # tail cols discarded

    cost = pl.CostEstimate(
        flops=2 * P * R * Q,
        transcendentals=0,
        bytes_accessed=2 * P * R * Q * itemsize + P * Q * 4,
    )

    rows_bytes = R * TQ * itemsize                          # one P-row, one input
    full_r_rows = budget // (4 * rows_bytes) if rows_bytes > 0 else 0

    if full_r_rows >= 1:
        # --- one-shot path: full R in a single block, TP > 1 where possible ---
        TP = max(1, min(P, full_r_rows, 512))
        pt = _cdiv(P, TP)
        if pt * qt < 2 and P > 1:                           # feed both v7x cores
            TP = _cdiv(P, 2)
            pt = _cdiv(P, TP)
        return pl.pallas_call(
            _mid_sum_oneshot_kernel,
            out_shape=jax.ShapeDtypeStruct((P, 1, Q), jnp.float32),
            grid=(pt, qt),
            in_specs=[
                pl.BlockSpec((TP, R, TQ), lambda p, q: (p, 0, q)),
                pl.BlockSpec((TP, R, TQ), lambda p, q: (p, 0, q)),
            ],
            out_specs=pl.BlockSpec((TP, 1, TQ), lambda p, q: (p, 0, q)),
            compiler_params=pltpu.CompilerParams(
                dimension_semantics=("parallel", "parallel"),
                vmem_limit_bytes=vmem_limit,
            ),
            cost_estimate=cost,
        )(a3, b3)

    # --- accumulating path for large R ---
    max_tr = max(8, budget // (4 * TQ * itemsize))
    TR = _pick_divisor(R, 8, min(max_tr, 4096))
    if TR is not None:
        rt, mask_r = R // TR, False
    else:
        TR = max(8, (min(max_tr, 4096) // 8) * 8)
        rt, mask_r = _cdiv(R, TR), (R % TR != 0)

    kernel = functools.partial(_mid_sum_acc_kernel, r_total=R, tr=TR, mask_r=mask_r)
    return pl.pallas_call(
        kernel,
        out_shape=jax.ShapeDtypeStruct((P, 1, Q), jnp.float32),
        grid=(P, qt, rt),
        in_specs=[
            pl.BlockSpec((1, TR, TQ), lambda p, q, r: (p, r, q)),
            pl.BlockSpec((1, TR, TQ), lambda p, q, r: (p, r, q)),
        ],
        out_specs=pl.BlockSpec((1, 1, TQ), lambda p, q, r: (p, 0, q)),
        scratch_shapes=[pltpu.VMEM((1, 1, TQ), jnp.float32)],
        compiler_params=pltpu.CompilerParams(
            dimension_semantics=("parallel", "parallel", "arbitrary"),
            vmem_limit_bytes=vmem_limit,
        ),
        cost_estimate=cost,
    )(a3, b3)


# ----------------------------------------------------------------------------
# Global mean: two-stage (lane/sublane-dense partial row sums -> tiny sum).
# ----------------------------------------------------------------------------
def _global_mean(a, b):
    total = a.size
    fa = a.reshape(-1)
    fb = b.reshape(-1)

    # Prefer a (M2, W) view with M2 % 8 == 0 (sublane dense), W lane dense.
    W = None
    for cand in (1024, 512, 256, 128):
        if total % cand == 0 and (total // cand) % 8 == 0:
            W = cand
            break
    if W is None:
        for cand in (1024, 512, 256, 128):
            if total % cand == 0:
                W = cand
                break

    if W is not None:
        sums = _row_sums_2d(fa.reshape(total // W, W), fb.reshape(total // W, W))
        s = jnp.sum(sums)
    elif total >= _LANES:
        # Indivisible total: kernel on the 128-aligned bulk; the (< 128 elem)
        # tail is summed in the wrapper (no jnp.pad of the full inputs).
        bulk = (total // _LANES) * _LANES
        sums = _row_sums_2d(fa[:bulk].reshape(bulk // _LANES, _LANES),
                            fb[:bulk].reshape(bulk // _LANES, _LANES))
        tail = jnp.sum(fa[bulk:].astype(jnp.float32) + fb[bulk:].astype(jnp.float32))
        s = jnp.sum(sums) + tail
    else:
        # Tiny input: single full-extent block.
        sums = _row_sums_2d(fa.reshape(1, total), fb.reshape(1, total))
        s = jnp.sum(sums)

    return (s / total).astype(a.dtype)


# ----------------------------------------------------------------------------
# SimpleMeanModule.forward
# ----------------------------------------------------------------------------
def simple_mean(a, b, dim=None, keepdim=False):
    assert a.shape == b.shape and a.dtype == b.dtype
    ndim = a.ndim

    # NOTE: faithful to the PyTorch module's `if self.dim:` -- a FALSY dim
    # (None, 0, (), []) takes the global-mean branch.  In particular dim=0
    # means "mean over all elements", matching the original module's quirk.
    if not dim:
        return _global_mean(a, b)

    dims = (dim,) if isinstance(dim, int) else tuple(dim)
    dims = tuple(sorted(d % ndim for d in dims))
    kept = tuple(d for d in range(ndim) if d not in dims)

    if keepdim:
        out_shape = tuple(1 if d in dims else a.shape[d] for d in range(ndim))
    else:
        out_shape = tuple(a.shape[d] for d in kept)

    red_count = 1
    for d in dims:
        red_count *= a.shape[d]

    if not kept:  # every axis reduced -> global mean
        return _global_mean(a, b).reshape(out_shape)

    contiguous = dims == tuple(range(dims[0], dims[-1] + 1))
    if contiguous:
        d0, d1 = dims[0], dims[-1]
        lead = 1
        for s in a.shape[:d0]:
            lead *= s
        trail = 1
        for s in a.shape[d1 + 1:]:
            trail *= s
        if d1 == ndim - 1:
            # Trailing reduction -> (M, K) row sums.
            M, K = lead, red_count
            sums = _row_sums_2d(a.reshape(M, K), b.reshape(M, K))
            out = (sums[:, 0] / red_count).astype(a.dtype)
            return out.reshape(out_shape)
        # Contiguous middle-axis reduction -> (P, R, Q), no transpose.
        P, R, Q = lead, red_count, trail
        sums = _mid_sums_3d(a.reshape(P, R, Q), b.reshape(P, R, Q))
        out = (sums[:, 0, :] / red_count).astype(a.dtype)
        return out.reshape(out_shape)

    # Non-contiguous reduction dims: transpose fallback (one extra HBM pass).
    # TODO(synk): fuse non-contiguous multi-axis reductions into a single grid.
    perm = kept + dims
    M = 1
    for d in kept:
        M *= a.shape[d]
    a_t = jnp.transpose(a, perm).reshape(M, red_count)
    b_t = jnp.transpose(b, perm).reshape(M, red_count)
    sums = _row_sums_2d(a_t, b_t)
    out = (sums[:, 0] / red_count).astype(a.dtype)
    return out.reshape(out_shape)


if __name__ == "__main__":
    key = jax.random.PRNGKey(0)
    k1, k2, k3, k4 = jax.random.split(key, 4)

    # NCHW, small shapes (as in torch_glow mean_test)
    a = jax.random.normal(k1, (2, 4, 16, 16), dtype=jnp.float32)
    b = jax.random.normal(k2, (2, 4, 16, 16), dtype=jnp.float32)

    # Case 1: dim=None -> global mean (scalar)
    out_global = jax.block_until_ready(simple_mean(a, b))
    ref_global = jnp.mean(a + b)
    assert jnp.allclose(out_global, ref_global, atol=1e-5, rtol=1e-5)

    # Case 2: dim=(2, 3), keepdim=False (trailing reduction, 2-D kernel)
    out_hw = jax.block_until_ready(simple_mean(a, b, dim=(2, 3), keepdim=False))
    ref_hw = jnp.mean(a + b, axis=(2, 3))
    assert out_hw.shape == ref_hw.shape
    assert jnp.allclose(out_hw, ref_hw, atol=1e-5, rtol=1e-5)

    # Case 3: dim=1, keepdim=True (middle-axis reduction, one-shot full-R path)
    out_c = jax.block_until_ready(simple_mean(a, b, dim=1, keepdim=True))
    ref_c = jnp.mean(a + b, axis=1, keepdims=True)
    assert out_c.shape == ref_c.shape
    assert jnp.allclose(out_c, ref_c, atol=1e-5, rtol=1e-5)

    # Case 4: non-contiguous dims (transpose fallback path)
    out_nc = jax.block_until_ready(simple_mean(a, b, dim=(1, 3), keepdim=False))
    ref_nc = jnp.mean(a + b, axis=(1, 3))
    assert out_nc.shape == ref_nc.shape
    assert jnp.allclose(out_nc, ref_nc, atol=1e-5, rtol=1e-5)

    # Case 5: awkward (non 8/128-aligned) shape exercises full-extent tiles,
    # the bulk+tail global-mean split and partial leading-dim blocks.
    c = jax.random.normal(k3, (3, 5, 10, 12), dtype=jnp.float32)
    d = jax.random.normal(k4, (3, 5, 10, 12), dtype=jnp.float32)
    out_g2 = jax.block_until_ready(simple_mean(c, d))
    assert jnp.allclose(out_g2, jnp.mean(c + d), atol=1e-5, rtol=1e-5)
    out_hw2 = jax.block_until_ready(simple_mean(c, d, dim=(2, 3)))
    assert jnp.allclose(out_hw2, jnp.mean(c + d, axis=(2, 3)), atol=1e-5, rtol=1e-5)
    out_c2 = jax.block_until_ready(simple_mean(c, d, dim=1, keepdim=True))
    assert jnp.allclose(out_c2, jnp.mean(c + d, axis=1, keepdims=True),
                        atol=1e-5, rtol=1e-5)

    print("KERNEL_OK")
</pallas_src>

<mosaic_0001>
module attributes {stable_mosaic.version = 11 : i64} {
  func.func @_row_sum_kernel(%arg0: i32, %arg1: i32, %arg2: memref<8x256xf32, #tpu.memory_space<vmem>>, %arg3: memref<8x256xf32, #tpu.memory_space<vmem>>, %arg4: memref<8x1xf32, #tpu.memory_space<vmem>>, %arg5: memref<8x128xf32, #tpu.memory_space<vmem>>) attributes {dimension_semantics = [#tpu.dimension_semantics<parallel>, #tpu.dimension_semantics<arbitrary>], iteration_bounds = array<i64: 1, 1>, scalar_prefetch = 0 : i64, scratch_operands = 1 : i64, tpu.core_type = #tpu.core_type<tc>, window_params = [{transform_indices = @transform_0, window_bounds = array<i64: 8, 256>}, {transform_indices = @transform_1, window_bounds = array<i64: 8, 256>}, {transform_indices = @transform_2, window_bounds = array<i64: 8, 1>}]} {
    %c0_i32 = arith.constant 0 : i32
    %0 = arith.cmpi eq, %arg1, %c0_i32 : i32
    %1 = arith.extui %0 : i1 to i32
    %c0_i32_0 = arith.constant 0 : i32
    %2 = arith.cmpi ne, %1, %c0_i32_0 : i32
    scf.if %2 {
      %cst = arith.constant 0.000000e+00 : f32
      %15 = vector.broadcast %cst : f32 to vector<8x128xf32>
      %c0_10 = arith.constant 0 : index
      %c0_11 = arith.constant 0 : index
      %16 = vector.load %arg5[%c0_10, %c0_11] : memref<8x128xf32, #tpu.memory_space<vmem>>, vector<8x128xf32>
      tpu.vector_store %arg5[%c0_10, %c0_11], %15 {strides = array<i32>} : memref<8x128xf32, #tpu.memory_space<vmem>>, vector<8x128xf32>,
    } else {
    }
    %c0 = arith.constant 0 : index
    %c0_1 = arith.constant 0 : index
    %3 = vector.load %arg2[%c0, %c0_1] : memref<8x256xf32, #tpu.memory_space<vmem>>, vector<8x256xf32>
    %c0_2 = arith.constant 0 : index
    %c0_3 = arith.constant 0 : index
    %4 = vector.load %arg3[%c0_2, %c0_3] : memref<8x256xf32, #tpu.memory_space<vmem>>, vector<8x256xf32>
    %5 = arith.addf %3, %4 : vector<8x256xf32>
    %6 = vector.extract_strided_slice %5 {offsets = [0, 0], sizes = [8, 128], strides = [1, 1]} : vector<8x256xf32> to vector<8x128xf32>
    %7 = vector.extract_strided_slice %5 {offsets = [0, 128], sizes = [8, 128], strides = [1, 1]} : vector<8x256xf32> to vector<8x128xf32>
    %8 = arith.addf %6, %7 : vector<8x128xf32>
    %c0_4 = arith.constant 0 : index
    %c0_5 = arith.constant 0 : index
    %9 = vector.load %arg5[%c0_4, %c0_5] : memref<8x128xf32, #tpu.memory_space<vmem>>, vector<8x128xf32>
    %10 = arith.addf %9, %8 : vector<8x128xf32>
    %c0_6 = arith.constant 0 : index
    %c0_7 = arith.constant 0 : index
    %11 = vector.load %arg5[%c0_6, %c0_7] : memref<8x128xf32, #tpu.memory_space<vmem>>, vector<8x128xf32>
    tpu.vector_store %arg5[%c0_6, %c0_7], %10 {strides = array<i32>} : memref<8x128xf32, #tpu.memory_space<vmem>>, vector<8x128xf32>,
    %c0_i32_8 = arith.constant 0 : i32
    %12 = arith.cmpi eq, %arg1, %c0_i32_8 : i32
    %13 = arith.extui %12 : i1 to i32
    %c0_i32_9 = arith.constant 0 : i32
    %14 = arith.cmpi ne, %13, %c0_i32_9 : i32
    scf.if %14 {
      %c0_10 = arith.constant 0 : index
      %c0_11 = arith.constant 0 : index
      %15 = vector.load %arg5[%c0_10, %c0_11] : memref<8x128xf32, #tpu.memory_space<vmem>>, vector<8x128xf32>
      %cst = arith.constant dense<0.000000e+00> : vector<8xf32>
      %16 = vector.multi_reduction <add>, %15, %cst [1] : vector<8x128xf32> to vector<8xf32>
      %17 = vector.shape_cast %16 : vector<8xf32> to vector<8x1xf32>
      %c0_12 = arith.constant 0 : index
      %c0_13 = arith.constant 0 : index
      %18 = vector.load %arg4[%c0_12, %c0_13] : memref<8x1xf32, #tpu.memory_space<vmem>>, vector<8x1xf32>
      tpu.vector_store %arg4[%c0_12, %c0_13], %17 {strides = array<i32>} : memref<8x1xf32, #tpu.memory_space<vmem>>, vector<8x1xf32>,
    } else {
    }
    return
  }
  func.func @transform_0(%arg0: i32, %arg1: i32) -> (i32, i32) {
    %c0_i32 = arith.constant 0 : i32
    return %arg0, %arg1 : i32, i32
  }
  func.func @transform_1(%arg0: i32, %arg1: i32) -> (i32, i32) {
    %c0_i32 = arith.constant 0 : i32
    return %arg0, %arg1 : i32, i32
  }
  func.func @transform_2(%arg0: i32, %arg1: i32) -> (i32, i32) {
    %c0_i32 = arith.constant 0 : i32
    %c0_i32_0 = arith.constant 0 : i32
    return %arg0, %c0_i32 : i32, i32
  }
}

</mosaic_0001>

<llo_original>
// kernel: tpu_custom_call.1
$region0: #{tpu_custom_call.1}
  #allocation0 [shape = 'u32[]', space=smem, size = 0x4, offset = 0x4, fixed_abs, tag = 'smem constant byte address 0x4 - core index']
  #allocation1 [shape = 'u32[144,128]{1,0:T(1,128)}', space=vmem, size = 0x12000, scoped, tag = 'internal scratch']
  #allocation2 [shape = 'f32[8,128]{1,0:T(8,128)}', space=vmem, size = 0x1000, scoped, tag = 'scratch operand']
  %s0 = inlined_call_operand.hbm [shape: f32[8,256], index: 0, kind: input, shape index: {}]
  %s1 = inlined_call_operand.hbm [shape: f32[8,256], index: 1, kind: input, shape index: {}]
  %s2 = inlined_call_operand.vmem [shape: f32[8,1], index: 2, kind: output, shape index: {}]
  %s3 = sld [smem:[#allocation0]]
  $region34: #{tpu_custom_call.1} parent=0
    _
  %s5 = ssub.s32 1, %s3
  %s6 = scalar_select 0, %s5, %s3
  $region1: #{tpu_custom_call.1} parent=0
    #allocation3 [shape = 'u8[8192]{0}', space=vmem, size = 0x2000, scoped, tag = 'input window, operand 0, single buffered']
    #allocation4 [shape = 's32[1]{0}', space=sflag, size = 0x4, scoped, tag = 'scoped memory for tpu_custom_call.1']
    #allocation5 [shape = 'u8[8192]{0}', space=vmem, size = 0x2000, scoped, tag = 'input window, operand 1, single buffered']
    #allocation6 [shape = 's32[1]{0}', space=sflag, size = 0x4, scoped, tag = 'scoped memory for tpu_custom_call.1']
    %7 = vsyncpa [#allocation4], 0
    %8 = vsyncpa [#allocation6], 0
    // Predicated region
    $region2: #{tpu_custom_call.1} parent=1 // pred_check
      _
    $region3: #{tpu_custom_call.1} parent=1 // pred_check_branch
      %10 = sbr.rel (0) target = $region5
    $region4: #{tpu_custom_call.1} parent=1 // pred_region
      %s12 = ssub.s32 256, 256
      %13 = vsyncadd [#allocation4], %s12
      %s15 = sshll.u32 [#allocation3], 4
      %s16 = int_to_ptr.vmem [resolvable:$true] %s15
      %18 = dma.hbm_to_vmem [thread:$0]  %s0, 256, %s16, [#allocation4]
    $region5: #{tpu_custom_call.1} parent=1 // pred_fallthru
      _
    // Predicated region
    $region6: #{tpu_custom_call.1} parent=1 // pred_check
      _
    $region7: #{tpu_custom_call.1} parent=1 // pred_check_branch
      %20 = sbr.rel (0) target = $region9
    $region8: #{tpu_custom_call.1} parent=1 // pred_region
      %s22 = ssub.s32 256, 256
      %23 = vsyncadd [#allocation6], %s22
      %s25 = sshll.u32 [#allocation5], 4
      %s26 = int_to_ptr.vmem [resolvable:$true] %s25
      %28 = dma.hbm_to_vmem [thread:$0]  %s1, 256, %s26, [#allocation6]
    $region9: #{tpu_custom_call.1} parent=1 // pred_fallthru
      _
    // Predicated region
    $region10: #{tpu_custom_call.1} parent=1 // pred_check
      _
    $region11: #{tpu_custom_call.1} parent=1 // pred_check_branch
      %30 = sbr.rel (0) target = $region13
    $region12: #{tpu_custom_call.1} parent=1 // pred_region
      %31 = dma.done [#allocation4], 256
    $region13: #{tpu_custom_call.1} parent=1 // pred_fallthru
      _
    // Predicated region
    $region14: #{tpu_custom_call.1} parent=1 // pred_check
      _
    $region15: #{tpu_custom_call.1} parent=1 // pred_check_branch
      %33 = sbr.rel (0) target = $region17
    $region16: #{tpu_custom_call.1} parent=1 // pred_region
      %34 = dma.done [#allocation6], 256
    $region17: #{tpu_custom_call.1} parent=1 // pred_fallthru
      _
    %p35 = scmp.eq.s32.totalorder 0, 0
    // Predicated region
    $region18: #{tpu_custom_call.1} parent=1 // pred_check
      %p36 = pneg %p35
    $region19: #{tpu_custom_call.1} parent=1 // pred_check_branch
      %38 = sbr.rel (%p36) target = $region21
    $region20: #{tpu_custom_call.1} parent=1 // pred_region
      %39 = vst [vmem:[#allocation2] sm:$0xff] 0.0
    $region21: #{tpu_custom_call.1} parent=1 // pred_fallthru
      _
    %v40 = vld [vmem:[#allocation3] sm:$0xff]
    %v41 = vld [vmem:[#allocation3 + $0x8] sm:$0xff]
    %v42 = vld [vmem:[#allocation5] sm:$0xff]
    %v43 = vld [vmem:[#allocation5 + $0x8] sm:$0xff]
    %v44 = vadd.f32 %v40, %v42
    %v45 = vadd.f32 %v41, %v43
    %v46 = vadd.f32 %v44, %v45
    %v47 = vld [vmem:[#allocation2] sm:$0xff]
    %v48 = vadd.f32 %v47, %v46
    %49 = vst [vmem:[#allocation2] sm:$0xff] %v48
    // Predicated region
    $region22: #{tpu_custom_call.1} parent=1 // pred_check
      %p50 = pneg %p35
    $region23: #{tpu_custom_call.1} parent=1 // pred_check_branch
      %52 = sbr.rel (%p50) target = $region25
    $region24: #{tpu_custom_call.1} parent=1 // pred_region
      %v53 = vld [vmem:[#allocation2] sm:$0xff]
      %54 = vadd.xlane.f32.xlu0 %v53
      %v55 = vpop.xlane.xlu0 %54
      %vm56 = vcmask 7168
      %57 = vst.msk [vmem:[%s2] sm:$0xff] %vm56, %v55
    $region25: #{tpu_custom_call.1} parent=1 // pred_fallthru
      _
    // Predicated region
    $region26: #{tpu_custom_call.1} parent=1 // pred_check
      _
    $region27: #{tpu_custom_call.1} parent=1 // pred_check_branch
      %59 = sbr.rel (0) target = $region29
    $region28: #{tpu_custom_call.1} parent=1 // pred_region
      _
    $region29: #{tpu_custom_call.1} parent=1 // pred_fallthru
      _
    // Predicated region
    $region30: #{tpu_custom_call.1} parent=1 // pred_check
      _
    $region31: #{tpu_custom_call.1} parent=1 // pred_check_branch
      %61 = sbr.rel (0) target = $region33
    $region32: #{tpu_custom_call.1} parent=1 // pred_region
      _
    $region33: #{tpu_custom_call.1} parent=1 // pred_fallthru
      _
    %62 = vsyncpa [#allocation4], 1
    %63 = vsyncpa [#allocation6], 1

</llo_original>
